<compile_context>
chip_gen: v5e
topology: v5e:2x2
jax: 0.10.0
libtpu: 0.0.40
codegen_flags: <defaults>
</compile_context>

<pallas_src>
import math

import jax
import jax.numpy as jnp
from jax.experimental import pallas as pl
from jax.experimental.pallas import tpu as pltpu


def _gelu_tanh(x, out_dtype=None):
    # GPT-2 gelu: 0.5*x*(1 + tanh(sqrt(2/pi)*(x + 0.044715*x^3)))   (f32 on VPU/EUP)
    c = math.sqrt(2.0 / math.pi)
    t = jnp.tanh(c * (x + 0.044715 * x * x * x))
    y = 0.5 * x * (1.0 + t)
    return y if out_dtype is None else y.astype(out_dtype)


# ----------------------------- kernels --------------------------------------


def mlp_resident_kernel(x_ref, wfc_ref, bfc_ref, wproj_ref, bproj_ref, o_ref):
    """Both weights resident in VMEM; one row tile per grid step, no k-tiling."""
    h = jnp.dot(x_ref[...], wfc_ref[...], preferred_element_type=jnp.float32)
    h = h + bfc_ref[...]                         # f32 bias add
    h = _gelu_tanh(h, jnp.bfloat16)              # bf16 cast fused into gelu output
    out = jnp.dot(h, wproj_ref[...], preferred_element_type=jnp.float32)
    out = out + bproj_ref[...]
    o_ref[...] = out.astype(o_ref.dtype)


def mlp_ktiled_kernel(x_ref, wfc_ref, bfc_ref, wproj_ref, bproj_ref, o_ref, acc_ref):
    """Hidden dim tiled on trailing reduction axis; f32 accumulator in VMEM scratch."""
    k = pl.program_id(1)

    @pl.when(k == 0)
    def _():
        acc_ref[...] = jnp.zeros_like(acc_ref)

    h = jnp.dot(x_ref[...], wfc_ref[...], preferred_element_type=jnp.float32)
    h = h + bfc_ref[...]
    h = _gelu_tanh(h, jnp.bfloat16)
    acc_ref[...] += jnp.dot(h, wproj_ref[...], preferred_element_type=jnp.float32)

    @pl.when(k == pl.num_programs(1) - 1)
    def _():
        o_ref[...] = (acc_ref[...] + bproj_ref[...]).astype(o_ref.dtype)


# ----------------------------- tiling helpers --------------------------------


def _pick_tile(total, target, aligns):
    """Largest tile <= target that is a multiple of some alignment (tried in order)
    and divides `total` evenly; falls back to `total` (full dim)."""
    for align in aligns:
        t = (min(target, total) // align) * align
        while t >= align:
            if total % t == 0:
                return t
            t -= align
    return total


def _resident_vmem_bytes(tm, nx, n_state, out_itemsize):
    return (
        2 * 2 * nx * n_state * 2          # w_fc + w_proj (bf16), worst-case 2 buffers
        + 2 * tm * nx * 2                 # x tile (bf16), double-buffered
        + 2 * tm * nx * out_itemsize      # out tile, double-buffered
        + tm * n_state * (4 + 2)          # h temporaries (f32 + bf16)
        + 2 * (n_state + nx) * 4          # biases (f32)
    )


def _ktiled_vmem_bytes(tm, tk, nx, n_state, out_itemsize):
    return (
        2 * tm * nx * 2                   # x tile
        + 2 * nx * tk * 2                 # w_fc column chunk
        + 2 * tk * nx * 2                 # w_proj row chunk
        + 2 * tm * nx * out_itemsize      # out tile
        + tm * nx * 4                     # f32 accumulator scratch
        + tm * tk * (4 + 2)               # h temporaries (f32 + bf16)
        + 2 * (tk + nx) * 4               # bias chunks (f32)
    )


# ----------------------------- wrapper ---------------------------------------


def mlp_forward(x, w_fc, b_fc, w_proj, b_proj, *, tm_target=512):
    """x: [B, T, nx]; w_fc: [nx, n_state]; b_fc: [n_state];
    w_proj: [n_state, nx]; b_proj: [nx]."""
    B, T, nx = x.shape
    n_state = w_fc.shape[1]
    M = B * T
    out_dtype = x.dtype
    oisz = jnp.dtype(out_dtype).itemsize

    # Generation-aware VMEM limit (v5e/v6e 128 MiB, v7x 64 MiB) with headroom.
    try:
        vmem_cap = int(pltpu.get_tpu_info().vmem_capacity_bytes)
    except Exception:
        vmem_cap = 64 * 1024 * 1024        # conservative (v7x) fallback
    vmem_limit = int(vmem_cap * 0.85)
    budget = int(vmem_limit * 0.9)

    # Row tile: MXU-aligned (256 then 128), capped at M//2 for M >= 256 so the
    # parallel row axis has >= 2 tiles (megacore sharding on v7x).
    tgt = tm_target if M < 256 else min(tm_target, M // 2)
    tm = _pick_tile(M, tgt, (256, 128, 8))

    use_resident = _resident_vmem_bytes(tm, nx, n_state, oisz) <= budget

    # bf16 feeds for the MXU; f32 accumulation inside the kernel.
    x2d = x.reshape(M, nx).astype(jnp.bfloat16)
    w_fc_b = w_fc.astype(jnp.bfloat16)
    w_proj_b = w_proj.astype(jnp.bfloat16)
    b_fc2d = b_fc.reshape(1, n_state).astype(jnp.float32)
    b_proj2d = b_proj.reshape(1, nx).astype(jnp.float32)

    flops = 4 * M * nx * n_state           # two matmuls, 2*M*nx*n_state each
    transcendentals = M * n_state          # one tanh per hidden activation

    if use_resident:
        grid = (M // tm,)
        in_specs = [
            pl.BlockSpec((tm, nx), lambda i: (i, 0)),        # x rows
            pl.BlockSpec((nx, n_state), lambda i: (0, 0)),   # w_fc resident
            pl.BlockSpec((1, n_state), lambda i: (0, 0)),    # b_fc
            pl.BlockSpec((n_state, nx), lambda i: (0, 0)),   # w_proj resident
            pl.BlockSpec((1, nx), lambda i: (0, 0)),         # b_proj
        ]
        out_specs = pl.BlockSpec((tm, nx), lambda i: (i, 0))
        scratch_shapes = []
        kernel = mlp_resident_kernel
        dim_sem = ("parallel",)
        weight_bytes = 2 * nx * n_state * 2                  # loaded once
    else:
        # Hidden-dim reduction chunk, lane-aligned, shrunk until the budget fits.
        tk_cands = [t for t in (1024, 512, 256, 128) if n_state % t == 0] or [n_state]
        tk = next(
            (t for t in tk_cands if _ktiled_vmem_bytes(tm, t, nx, n_state, oisz) <= budget),
            tk_cands[-1],
        )
        while (_ktiled_vmem_bytes(tm, tk, nx, n_state, oisz) > budget
               and tm >= 256 and M % (tm // 2) == 0):
            tm //= 2

        grid = (M // tm, n_state // tk)                      # reduction axis last
        in_specs = [
            pl.BlockSpec((tm, nx), lambda i, k: (i, 0)),     # x rows
            pl.BlockSpec((nx, tk), lambda i, k: (0, k)),     # w_fc column chunk
            pl.BlockSpec((1, tk), lambda i, k: (0, k)),      # b_fc chunk
            pl.BlockSpec((tk, nx), lambda i, k: (k, 0)),     # w_proj row chunk
            pl.BlockSpec((1, nx), lambda i, k: (0, 0)),      # b_proj (full)
        ]
        out_specs = pl.BlockSpec((tm, nx), lambda i, k: (i, 0))
        scratch_shapes = [pltpu.VMEM((tm, nx), jnp.float32)]
        kernel = mlp_ktiled_kernel
        dim_sem = ("parallel", "arbitrary")
        weight_bytes = (M // tm) * 2 * nx * n_state * 2      # streamed per row tile

    bytes_accessed = (
        M * nx * 2                 # x (bf16)
        + weight_bytes             # weights (path-dependent traffic)
        + (n_state + nx) * 4       # biases
        + M * nx * oisz            # output
    )

    out2d = pl.pallas_call(
        kernel,
        out_shape=jax.ShapeDtypeStruct((M, nx), out_dtype),
        grid_spec=pltpu.PrefetchScalarGridSpec(
            num_scalar_prefetch=0,
            grid=grid,
            in_specs=in_specs,
            out_specs=out_specs,
            scratch_shapes=scratch_shapes,
        ),
        compiler_params=pltpu.CompilerParams(
            dimension_semantics=dim_sem,
            vmem_limit_bytes=vmem_limit,
        ),
        cost_estimate=pl.CostEstimate(
            flops=flops,
            transcendentals=transcendentals,
            bytes_accessed=bytes_accessed,
        ),
    )(x2d, w_fc_b, b_fc2d, w_proj_b, b_proj2d)

    return out2d.reshape(B, T, nx)


# ----------------------------- reference & test -------------------------------


def mlp_reference(x, w_fc, b_fc, w_proj, b_proj):
    # Matches the kernel's numerics: bf16 matmul inputs, f32 accumulation.
    B, T, nx = x.shape
    xb = x.reshape(-1, nx).astype(jnp.bfloat16)
    h = jnp.dot(xb, w_fc.astype(jnp.bfloat16),
                preferred_element_type=jnp.float32) + b_fc
    h = _gelu_tanh(h, jnp.bfloat16)
    out = jnp.dot(h, w_proj.astype(jnp.bfloat16),
                  preferred_element_type=jnp.float32) + b_proj
    return out.reshape(B, T, nx).astype(x.dtype)


if __name__ == "__main__":
    # Small shapes consistent with the module: n_embd=32, n_state=4*n_embd=128.
    B, T, nx = 2, 8, 32
    n_state = 4 * nx

    key = jax.random.PRNGKey(0)
    kx, kfc, kproj = jax.random.split(key, 3)

    x = jax.random.normal(kx, (B, T, nx), dtype=jnp.float32)
    # Conv1D init: weight ~ N(0, 0.02), bias = 0
    w_fc = 0.02 * jax.random.normal(kfc, (nx, n_state), dtype=jnp.float32)
    b_fc = jnp.zeros((n_state,), dtype=jnp.float32)
    w_proj = 0.02 * jax.random.normal(kproj, (n_state, nx), dtype=jnp.float32)
    b_proj = jnp.zeros((nx,), dtype=jnp.float32)

    out = mlp_forward(x, w_fc, b_fc, w_proj, b_proj)
    out = jax.block_until_ready(out)

    ref = mlp_reference(x, w_fc, b_fc, w_proj, b_proj)
    assert out.shape == (B, T, nx)
    # bf16 MXU inputs -> loosen tolerance vs the pure-f32 path.
    assert jnp.allclose(out, ref, atol=1e-2, rtol=1e-2), "mismatch vs reference"

    print("KERNEL_OK")
</pallas_src>

<mosaic_0001>
module attributes {stable_mosaic.version = 11 : i64} {
  func.func @mlp_resident_kernel(%arg0: i32, %arg1: memref<16x32xbf16, #tpu.memory_space<vmem>>, %arg2: memref<32x128xbf16, #tpu.memory_space<vmem>>, %arg3: memref<1x128xf32, #tpu.memory_space<vmem>>, %arg4: memref<128x32xbf16, #tpu.memory_space<vmem>>, %arg5: memref<1x32xf32, #tpu.memory_space<vmem>>, %arg6: memref<16x32xf32, #tpu.memory_space<vmem>>) attributes {dimension_semantics = [#tpu.dimension_semantics<parallel>], iteration_bounds = array<i64: 1>, scalar_prefetch = 0 : i64, scratch_operands = 0 : i64, tpu.core_type = #tpu.core_type<tc>, window_params = [{transform_indices = @transform_0, window_bounds = array<i64: 16, 32>}, {pipeline_mode = #tpu.pipeline_mode<synchronous>, transform_indices = @transform_1, window_bounds = array<i64: 32, 128>}, {pipeline_mode = #tpu.pipeline_mode<synchronous>, transform_indices = @transform_2, window_bounds = array<i64: 1, 128>}, {pipeline_mode = #tpu.pipeline_mode<synchronous>, transform_indices = @transform_3, window_bounds = array<i64: 128, 32>}, {pipeline_mode = #tpu.pipeline_mode<synchronous>, transform_indices = @transform_4, window_bounds = array<i64: 1, 32>}, {transform_indices = @transform_5, window_bounds = array<i64: 16, 32>}]} {
    %c0 = arith.constant 0 : index
    %c0_0 = arith.constant 0 : index
    %0 = vector.load %arg1[%c0, %c0_0] : memref<16x32xbf16, #tpu.memory_space<vmem>>, vector<16x32xbf16>
    %c0_1 = arith.constant 0 : index
    %c0_2 = arith.constant 0 : index
    %1 = vector.load %arg2[%c0_1, %c0_2] : memref<32x128xbf16, #tpu.memory_space<vmem>>, vector<32x128xbf16>
    %cst = arith.constant dense<0.000000e+00> : vector<16x128xf32>
    %2 = tpu.matmul %0, %1, %cst {dimension_numbers = #tpu.dot_dimension_numbers<[1], [0], [0], [1], [0, 0, 1, 1], [], []>} : vector<16x32xbf16>, vector<32x128xbf16>, vector<16x128xf32> -> vector<16x128xf32>
    %c0_3 = arith.constant 0 : index
    %c0_4 = arith.constant 0 : index
    %3 = vector.load %arg3[%c0_3, %c0_4] : memref<1x128xf32, #tpu.memory_space<vmem>>, vector<1x128xf32>
    %4 = vector.broadcast %3 : vector<1x128xf32> to vector<16x128xf32>
    %5 = arith.addf %2, %4 : vector<16x128xf32>
    %cst_5 = arith.constant 4.471500e-02 : f32
    %6 = vector.broadcast %cst_5 : f32 to vector<16x128xf32>
    %7 = arith.mulf %6, %5 : vector<16x128xf32>
    %8 = arith.mulf %7, %5 : vector<16x128xf32>
    %9 = arith.mulf %8, %5 : vector<16x128xf32>
    %10 = arith.addf %5, %9 : vector<16x128xf32>
    %cst_6 = arith.constant 0.797884583 : f32
    %11 = vector.broadcast %cst_6 : f32 to vector<16x128xf32>
    %12 = arith.mulf %11, %10 : vector<16x128xf32>
    %13 = math.tanh %12 : vector<16x128xf32>
    %cst_7 = arith.constant 5.000000e-01 : f32
    %14 = vector.broadcast %cst_7 : f32 to vector<16x128xf32>
    %15 = arith.mulf %14, %5 : vector<16x128xf32>
    %cst_8 = arith.constant 1.000000e+00 : f32
    %16 = vector.broadcast %cst_8 : f32 to vector<16x128xf32>
    %17 = arith.addf %16, %13 : vector<16x128xf32>
    %18 = arith.mulf %15, %17 : vector<16x128xf32>
    %19 = arith.truncf %18 : vector<16x128xf32> to vector<16x128xbf16>
    %c0_9 = arith.constant 0 : index
    %c0_10 = arith.constant 0 : index
    %20 = vector.load %arg4[%c0_9, %c0_10] : memref<128x32xbf16, #tpu.memory_space<vmem>>, vector<128x32xbf16>
    %cst_11 = arith.constant dense<0.000000e+00> : vector<16x32xf32>
    %21 = tpu.matmul %19, %20, %cst_11 {dimension_numbers = #tpu.dot_dimension_numbers<[1], [0], [0], [1], [0, 0, 1, 1], [], []>} : vector<16x128xbf16>, vector<128x32xbf16>, vector<16x32xf32> -> vector<16x32xf32>
    %c0_12 = arith.constant 0 : index
    %c0_13 = arith.constant 0 : index
    %22 = vector.load %arg5[%c0_12, %c0_13] : memref<1x32xf32, #tpu.memory_space<vmem>>, vector<1x32xf32>
    %23 = vector.broadcast %22 : vector<1x32xf32> to vector<16x32xf32>
    %24 = arith.addf %21, %23 : vector<16x32xf32>
    %c0_14 = arith.constant 0 : index
    %c0_15 = arith.constant 0 : index
    %25 = vector.load %arg6[%c0_14, %c0_15] : memref<16x32xf32, #tpu.memory_space<vmem>>, vector<16x32xf32>
    tpu.vector_store %arg6[%c0_14, %c0_15], %24 {strides = array<i32>} : memref<16x32xf32, #tpu.memory_space<vmem>>, vector<16x32xf32>,
    return
  }
  func.func @transform_0(%arg0: i32) -> (i32, i32) {
    %c0_i32 = arith.constant 0 : i32
    %c0_i32_0 = arith.constant 0 : i32
    return %arg0, %c0_i32 : i32, i32
  }
  func.func @transform_1(%arg0: i32) -> (i32, i32) {
    %c0_i32 = arith.constant 0 : i32
    %c0_i32_0 = arith.constant 0 : i32
    %c0_i32_1 = arith.constant 0 : i32
    return %c0_i32, %c0_i32_0 : i32, i32
  }
  func.func @transform_2(%arg0: i32) -> (i32, i32) {
    %c0_i32 = arith.constant 0 : i32
    %c0_i32_0 = arith.constant 0 : i32
    %c0_i32_1 = arith.constant 0 : i32
    return %c0_i32, %c0_i32_0 : i32, i32
  }
  func.func @transform_3(%arg0: i32) -> (i32, i32) {
    %c0_i32 = arith.constant 0 : i32
    %c0_i32_0 = arith.constant 0 : i32
    %c0_i32_1 = arith.constant 0 : i32
    return %c0_i32, %c0_i32_0 : i32, i32
  }
  func.func @transform_4(%arg0: i32) -> (i32, i32) {
    %c0_i32 = arith.constant 0 : i32
    %c0_i32_0 = arith.constant 0 : i32
    %c0_i32_1 = arith.constant 0 : i32
    return %c0_i32, %c0_i32_0 : i32, i32
  }
  func.func @transform_5(%arg0: i32) -> (i32, i32) {
    %c0_i32 = arith.constant 0 : i32
    %c0_i32_0 = arith.constant 0 : i32
    return %arg0, %c0_i32 : i32, i32
  }
}

</mosaic_0001>

<llo_original>
// kernel: tpu_custom_call.1
$region0: #{tpu_custom_call.1}
  #allocation0 [shape = 'u32[]', space=smem, size = 0x4, offset = 0x4, fixed_abs, tag = 'smem constant byte address 0x4 - core index']
  #allocation1 [shape = 'u32[72,128]{1,0:T(1,128)}', space=vmem, size = 0x9000, scoped, tag = 'internal scratch']
  %s0 = inlined_call_operand.vmem [shape: bf16[16,32], index: 0, kind: input, shape index: {}]
  %s1 = inlined_call_operand.vmem [shape: bf16[32,128], index: 1, kind: input, shape index: {}]
  %s2 = inlined_call_operand.vmem [shape: f32[1,128], index: 2, kind: input, shape index: {}]
  %s3 = inlined_call_operand.vmem [shape: bf16[128,32], index: 3, kind: input, shape index: {}]
  %s4 = inlined_call_operand.vmem [shape: f32[1,32], index: 4, kind: input, shape index: {}]
  %s5 = inlined_call_operand.hbm [shape: f32[16,32], index: 5, kind: output, shape index: {}]
  %s6 = sld [smem:[#allocation0]]
  $region30: #{tpu_custom_call.1} parent=0
    _
  %s8 = ssub.s32 1, %s6
  %s9 = scalar_select 0, %s8, %s6
  $region1: #{tpu_custom_call.1} parent=0
    #allocation2 [shape = 'u8[8192]{0}', space=vmem, size = 0x2000, scoped, tag = 'output window, operand 0, single buffered']
    #allocation3 [shape = 's32[1]{0}', space=sflag, size = 0x4, scoped, tag = 'scoped memory for tpu_custom_call.1']
    %10 = vsyncpa [#allocation3], 0
    // Predicated region
    $region2: #{tpu_custom_call.1} parent=1 // pred_check
      _
    $region3: #{tpu_custom_call.1} parent=1 // pred_check_branch
      %12 = sbr.rel (0) target = $region5
    $region4: #{tpu_custom_call.1} parent=1 // pred_region
      _
    $region5: #{tpu_custom_call.1} parent=1 // pred_fallthru
      _
    // Predicated region
    $region6: #{tpu_custom_call.1} parent=1 // pred_check
      _
    $region7: #{tpu_custom_call.1} parent=1 // pred_check_branch
      %14 = sbr.rel (0) target = $region9
    $region8: #{tpu_custom_call.1} parent=1 // pred_region
      _
    $region9: #{tpu_custom_call.1} parent=1 // pred_fallthru
      _
    // Predicated region
    $region10: #{tpu_custom_call.1} parent=1 // pred_check
      _
    $region11: #{tpu_custom_call.1} parent=1 // pred_check_branch
      %16 = sbr.rel (0) target = $region13
    $region12: #{tpu_custom_call.1} parent=1 // pred_region
      _
    $region13: #{tpu_custom_call.1} parent=1 // pred_fallthru
      _
    // Predicated region
    $region14: #{tpu_custom_call.1} parent=1 // pred_check
      _
    $region15: #{tpu_custom_call.1} parent=1 // pred_check_branch
      %18 = sbr.rel (0) target = $region17
    $region16: #{tpu_custom_call.1} parent=1 // pred_region
      _
    $region17: #{tpu_custom_call.1} parent=1 // pred_fallthru
      _
    // Predicated region
    $region18: #{tpu_custom_call.1} parent=1 // pred_check
      _
    $region19: #{tpu_custom_call.1} parent=1 // pred_check_branch
      %20 = sbr.rel (0) target = $region21
    $region20: #{tpu_custom_call.1} parent=1 // pred_region
      _
    $region21: #{tpu_custom_call.1} parent=1 // pred_fallthru
      _
    %v22 = vld [vmem:[%s0] sm:$0xf]
    %v23 = vld [vmem:[%s0 + $0x4] sm:$0xf]
    %v24 = vld [vmem:[%s1] sm:$0xf]
    %v25 = vld [vmem:[%s1 + $0x4] sm:$0xf]
    %v26 = vld [vmem:[%s1 + $0x8] sm:$0xf]
    %v27 = vld [vmem:[%s1 + $0xc] sm:$0xf]
    %v28 = vld [vmem:[%s2] sm:$0x1]
    %v30 = vperm.slane %v28, 0
    %v34 = vunpack.c.l.b16 %v22
    %v35 = vunpack.c.l.b16 %v23
    %v36 = vpack.c.b16 %v35, %v34
    %v41 = vunpack.c.l.b16 %v24
    %v42 = vunpack.c.l.b16 %v25
    %v43 = vunpack.c.l.b16 %v26
    %v44 = vunpack.c.l.b16 %v27
    %v45 = vpack.c.b16 %v42, %v41
    %v46 = vpack.c.b16 %v44, %v43
    %vm49 = vcmask 261120
    %v51 = vsel %vm49, %v36, 0
    %53 = vmatpush.bf16.msra.mxu0 0
    %54 = vmatpush.bf16.msra.mxu0 0
    %55 = vmatpush.bf16.msra.mxu0 0
    %56 = vmatpush.bf16.msra.mxu0 0
    %57 = vmatpush.bf16.msra.mxu0 0
    %58 = vmatpush.bf16.msra.mxu0 0
    %59 = vmatpush.bf16.msra.mxu0 %v46
    %60 = vmatpush.bf16.msra.mxu0 %v45
    %61 = vmatmul.bf16.gmra.mxu0 %v51
    %v62 = vpop.f32.mrf.mxu0
    %v63 = vadd.f32 %v30, %v62
    %v64 = vpop.f32.mrf.mxu0
    %v65 = vadd.f32 %v30, %v64
    %66 = vdwg.mxu0
    %v67 = vmul.f32 %v63, 0.044715
    %v68 = vmul.f32 %v65, 0.044715
    %v69 = vmul.f32 %v67, %v63
    %v70 = vmul.f32 %v68, %v65
    %v71 = vmul.f32 %v69, %v63
    %v72 = vmul.f32 %v70, %v65
    %v73 = vadd.f32 %v63, %v71
    %v74 = vadd.f32 %v65, %v72
    %v75 = vmul.f32 %v73, 0.7978846
    %v76 = vmul.f32 %v74, 0.7978846
    %v77 = vtanh.pop %v75
    %v78 = vtanh.pop %v76
    %v79 = vmul.f32 %v63, 0.5
    %v80 = vmul.f32 %v65, 0.5
    %v81 = vadd.f32 %v77, 1.0
    %v82 = vadd.f32 %v78, 1.0
    %v83 = vmul.f32 %v79, %v81
    %v84 = vmul.f32 %v80, %v82
    %v85 = vpack.c.bf16 %v84, %v83
    %v86 = vld [vmem:[%s3] sm:$0xf]
    %v87 = vld [vmem:[%s3 + $0x4] sm:$0xf]
    %v88 = vld [vmem:[%s3 + $0x8] sm:$0xf]
    %v89 = vld [vmem:[%s3 + $0xc] sm:$0xf]
    %v90 = vld [vmem:[%s3 + $0x10] sm:$0xf]
    %v91 = vld [vmem:[%s3 + $0x14] sm:$0xf]
    %v92 = vld [vmem:[%s3 + $0x18] sm:$0xf]
    %v93 = vld [vmem:[%s3 + $0x1c] sm:$0xf]
    %v94 = vld [vmem:[%s3 + $0x20] sm:$0xf]
    %v95 = vld [vmem:[%s3 + $0x24] sm:$0xf]
    %v96 = vld [vmem:[%s3 + $0x28] sm:$0xf]
    %v97 = vld [vmem:[%s3 + $0x2c] sm:$0xf]
    %v98 = vld [vmem:[%s3 + $0x30] sm:$0xf]
    %v99 = vld [vmem:[%s3 + $0x34] sm:$0xf]
    %v100 = vld [vmem:[%s3 + $0x38] sm:$0xf]
    %v101 = vld [vmem:[%s3 + $0x3c] sm:$0xf]
    %v102 = vld [vmem:[%s4] sm:$0x1]
    %v104 = vperm.slane %v102, 0
    %v122 = vunpack.c.l.b16 %v86
    %v123 = vunpack.c.l.b16 %v87
    %v124 = vunpack.c.l.b16 %v88
    %v125 = vunpack.c.l.b16 %v89
    %v126 = vunpack.c.l.b16 %v90
    %v127 = vunpack.c.l.b16 %v91
    %v128 = vunpack.c.l.b16 %v92
    %v129 = vunpack.c.l.b16 %v93
    %v130 = vunpack.c.l.b16 %v94
    %v131 = vunpack.c.l.b16 %v95
    %v132 = vunpack.c.l.b16 %v96
    %v133 = vunpack.c.l.b16 %v97
    %v134 = vunpack.c.l.b16 %v98
    %v135 = vunpack.c.l.b16 %v99
    %v136 = vunpack.c.l.b16 %v100
    %v137 = vunpack.c.l.b16 %v101
    %v138 = vpack.c.b16 %v123, %v122
    %v139 = vpack.c.b16 %v125, %v124
    %v140 = vpack.c.b16 %v127, %v126
    %v141 = vpack.c.b16 %v129, %v128
    %v142 = vpack.c.b16 %v131, %v130
    %v143 = vpack.c.b16 %v133, %v132
    %v144 = vpack.c.b16 %v135, %v134
    %v145 = vpack.c.b16 %v137, %v136
    %154 = vmatpush.bf16.msra.mxu0 %v145
    %155 = vmatpush.bf16.msra.mxu0 %v144
    %156 = vmatpush.bf16.msra.mxu0 %v143
    %157 = vmatpush.bf16.msra.mxu0 %v142
    %158 = vmatpush.bf16.msra.mxu0 %v141
    %159 = vmatpush.bf16.msra.mxu0 %v140
    %160 = vmatpush.bf16.msra.mxu0 %v139
    %161 = vmatpush.bf16.msra.mxu0 %v138
    %162 = vmatmul.bf16.gmra.mxu0 %v85
    %v163 = vpop.f32.mrf.mxu0
    %v164 = vadd.f32 %v104, %v163
    %v165 = vpop.f32.mrf.mxu0
    %v166 = vadd.f32 %v104, %v165
    %167 = vdwg.mxu0
    %168 = vst.msk [vmem:[#allocation2] sm:$0xff] %vm49, %v164
    %169 = vst.msk [vmem:[#allocation2 + $0x8] sm:$0xff] %vm49, %v166
    // Predicated region
    $region22: #{tpu_custom_call.1} parent=1 // pred_check
      _
    $region23: #{tpu_custom_call.1} parent=1 // pred_check_branch
      %171 = sbr.rel (0) target = $region25
    $region24: #{tpu_custom_call.1} parent=1 // pred_region
      %173 = vsyncadd [#allocation3], 0
      %s174 = sshll.u32 [#allocation2], 4
      %s175 = int_to_ptr.vmem [resolvable:$true] %s174
      %s176 = sshll.u32 %s5, 4
      %s177 = int_to_ptr.hbm [resolvable:$true] %s176
      %182 = dma.vmem_to_hbm [thread:$0]  %s175, 256, %s177, [#allocation3], 128, 128, 8
    $region25: #{tpu_custom_call.1} parent=1 // pred_fallthru
      _
    // Predicated region
    $region26: #{tpu_custom_call.1} parent=1 // pred_check
      _
    $region27: #{tpu_custom_call.1} parent=1 // pred_check_branch
      %184 = sbr.rel (0) target = $region29
    $region28: #{tpu_custom_call.1} parent=1 // pred_region
      %186 = dma.done [#allocation3], 256
    $region29: #{tpu_custom_call.1} parent=1 // pred_fallthru
      _
    %187 = vsyncpa [#allocation3], 1

</llo_original>
